<compile_context>
chip_gen: v7x
topology: tpu7x:2x2x1
jax: 0.10.0
libtpu: 0.0.40
codegen_flags: <defaults>
</compile_context>

<pallas_src>
import functools

import jax
import jax.numpy as jnp
from jax import lax
from jax.experimental import pallas as pl
from jax.experimental.pallas import tpu as pltpu

LN_EPS = 1e-5          # torch.nn.LayerNorm default eps
NEG_SLOPE = 0.01       # torch.nn.LeakyReLU default negative_slope

_TARGET_STEP_BYTES = 4 * 2**20   # ~4 MiB of (x + out) streamed per grid step
_MAX_BLOCK_M = 8192


def _round_up(x, m):
    return ((x + m - 1) // m) * m


@functools.lru_cache(maxsize=None)
def _tpu_hw_info():
    """(vmem_capacity_bytes, num_tensorcores_per_chip) with safe fallbacks."""
    kind = ""
    try:
        kind = jax.devices()[0].device_kind.lower()
    except Exception:
        pass
    is_v7 = ("v7" in kind) or ("7x" in kind)
    vmem_cap = (64 if is_v7 else 128) * 2**20
    try:
        vmem_cap = int(getattr(pltpu.get_tpu_info(), "vmem_capacity_bytes", vmem_cap))
    except Exception:
        pass
    num_tc = 2 if is_v7 else 1
    return vmem_cap, num_tc


def _fc_kernel(x_ref, w_ref, p_ref, o_ref):
    """One (bm, in_ch) row-tile: Linear -> LayerNorm -> LeakyReLU."""
    x = x_ref[...]
    w = w_ref[...]
    if x.dtype != w.dtype:
        # In-kernel cast (VPU) so the bf16 MXU path does not cost an extra
        # wrapper-side HBM pass over x.
        x = x.astype(w.dtype)
    y = jnp.dot(x, w, preferred_element_type=jnp.float32)

    params = p_ref[...]                      # (3, out_ch) f32: bias, gamma, beta
    y = y + params[0:1, :]

    # LayerNorm over the lane axis (out_ch); biased variance like PyTorch.
    mean = jnp.mean(y, axis=-1, keepdims=True)
    c = y - mean
    var = jnp.mean(c * c, axis=-1, keepdims=True)
    yn = c * lax.rsqrt(var + LN_EPS)
    yn = yn * params[1:2, :] + params[2:3, :]

    # LeakyReLU on the VPU.
    o_ref[...] = jnp.where(yn >= 0, yn, NEG_SLOPE * yn).astype(o_ref.dtype)
    # TODO(synk): if out_ch < 128, present a lane-dense (bm/k, k*out_ch) output
    # slab instead of a sub-128-lane block to avoid masked vst partial stores.


def _choose_block_m(n, in_ch, out_ch, x_itemsize, mm_itemsize, out_itemsize,
                    vmem_cap, num_tc):
    """Budget-driven M-tile.

    Stream ~_TARGET_STEP_BYTES of (x + out) HBM bytes per grid step so per-step
    DMA time dominates the fixed ~0.35us step overhead, bounded by a VMEM
    budget that includes double-buffered tiles AND the kernel's f32
    temporaries, and capped at the (rounded-up) batch size.
    """
    stream_per_row = in_ch * x_itemsize + out_ch * out_itemsize      # HBM bytes/row
    vmem_per_row = (2 * in_ch * x_itemsize        # double-buffered x tile
                    + 2 * out_ch * out_itemsize   # double-buffered out tile
                    + in_ch * mm_itemsize         # in-kernel cast of the x tile
                    + 4 * out_ch * 4)             # f32 temporaries (y, c, yn, ...)
    resident = 2 * in_ch * out_ch * mm_itemsize + 2 * 3 * out_ch * 4
    tile_budget = max(int(0.75 * vmem_cap) - resident, 2**20)

    bm = _TARGET_STEP_BYTES // stream_per_row
    bm = min(bm, tile_budget // vmem_per_row, _MAX_BLOCK_M)

    n8 = _round_up(max(n, 1), 8)
    bm = min(bm, n8)
    # Shrink to keep >= 2 grid entries only when the chip actually has two
    # TensorCores (v7x); on v5e/v6e that just doubles per-step overhead.
    if num_tc >= 2 and bm >= n8 and n >= 256:
        bm = n8 // 2
    # Alignment: MXU/lane friendly when large, 16-row multiple otherwise
    # (keeps bf16 sublane packing clean).
    if bm >= 256:
        bm = (bm // 128) * 128
    elif bm >= 16:
        bm = (bm // 16) * 16
    return int(max(bm, 8))


@functools.partial(jax.jit, static_argnames=("block_m", "matmul_dtype", "out_dtype"))
def fc_forward(x, w, b, gamma, beta, *, block_m=None, matmul_dtype=None,
               out_dtype=None):
    """y = LeakyReLU(LayerNorm(x @ w + b)).  x: (..., in_ch), w: (in_ch, out_ch)."""
    orig_shape = x.shape
    in_ch = orig_shape[-1]
    out_ch = w.shape[1]
    out_dtype = jnp.dtype(out_dtype if out_dtype is not None else x.dtype)

    x2 = x.reshape(-1, in_ch)
    n = x2.shape[0]

    # Only the (small) weight is cast in the wrapper; x stays in its HBM dtype
    # and is cast per-tile inside the kernel.
    if matmul_dtype is not None:
        w = w.astype(matmul_dtype)

    # Pack bias / LN gamma / LN beta into one f32 operand (fewer tiny buffers).
    params = jnp.stack([b, gamma, beta]).astype(jnp.float32)   # (3, out_ch)

    x_itemsize = x2.dtype.itemsize
    mm_itemsize = w.dtype.itemsize
    out_itemsize = out_dtype.itemsize
    vmem_cap, num_tc = _tpu_hw_info()

    bm = (_choose_block_m(n, in_ch, out_ch, x_itemsize, mm_itemsize,
                          out_itemsize, vmem_cap, num_tc)
          if block_m is None else block_m)
    # Ragged batch: no wrapper pad/slice — Pallas masks the partial last block.
    grid_m = pl.cdiv(n, bm)

    # VMEM footprint incl. kernel-internal f32 temporaries (review item, v7x).
    vmem_need = (2 * bm * in_ch * x_itemsize          # double-buffered x
                 + 2 * bm * out_ch * out_itemsize     # double-buffered out
                 + bm * in_ch * mm_itemsize           # in-kernel cast of x
                 + 4 * bm * out_ch * 4                # f32 temporaries
                 + 2 * in_ch * out_ch * mm_itemsize   # resident W
                 + 2 * 3 * out_ch * 4)                # params
    vmem_limit = int(min(max(int(vmem_need * 1.25), 32 * 2**20),
                         int(0.75 * vmem_cap)))

    cost = pl.CostEstimate(
        flops=2 * n * in_ch * out_ch + 10 * n * out_ch,
        transcendentals=n,                            # one rsqrt per row
        bytes_accessed=(x2.size * x_itemsize
                        + w.size * mm_itemsize
                        + params.size * 4
                        + n * out_ch * out_itemsize),
    )

    out = pl.pallas_call(
        _fc_kernel,
        out_shape=jax.ShapeDtypeStruct((n, out_ch), out_dtype),
        grid_spec=pltpu.PrefetchScalarGridSpec(
            num_scalar_prefetch=0,
            grid=(grid_m,),
            in_specs=[
                pl.BlockSpec((bm, in_ch), lambda i: (i, 0)),      # x row-tile
                # TODO(synk): use pipeline_mode=pl.Buffered(1) for the resident
                # W / params (constant index_map) and K-tiling with a VMEM
                # accumulator once in_ch*out_ch is large under v7x's 64 MiB.
                pl.BlockSpec((in_ch, out_ch), lambda i: (0, 0)),  # W (resident)
                pl.BlockSpec((3, out_ch), lambda i: (0, 0)),      # bias/gamma/beta
            ],
            out_specs=pl.BlockSpec((bm, out_ch), lambda i: (i, 0)),
        ),
        compiler_params=pltpu.CompilerParams(
            dimension_semantics=("parallel",),
            vmem_limit_bytes=vmem_limit,
        ),
        cost_estimate=cost,
    )(x2, w, params)

    return out.reshape(*orig_shape[:-1], out_ch)


def _reference(x, w, b, gamma, beta):
    y = x @ w + b
    mean = jnp.mean(y, axis=-1, keepdims=True)
    var = jnp.mean((y - mean) ** 2, axis=-1, keepdims=True)
    yn = (y - mean) / jnp.sqrt(var + LN_EPS)
    yn = yn * gamma + beta
    return jnp.where(yn >= 0, yn, NEG_SLOPE * yn)


if __name__ == "__main__":
    in_ch, out_ch = 32, 128
    lead = (4, 8)                 # flattened batch = 32

    key = jax.random.PRNGKey(0)
    kx, kw, kb = jax.random.split(key, 3)

    x = jax.random.normal(kx, (*lead, in_ch), dtype=jnp.float32)

    # Deterministic parameter init (PyTorch Linear-style uniform bounds).
    bound = 1.0 / (in_ch ** 0.5)
    w = jax.random.uniform(kw, (in_ch, out_ch), jnp.float32, -bound, bound)
    b = jax.random.uniform(kb, (out_ch,), jnp.float32, -bound, bound)
    gamma = jnp.ones((out_ch,), jnp.float32)   # LayerNorm default weight
    beta = jnp.zeros((out_ch,), jnp.float32)   # LayerNorm default bias

    ref = _reference(x.reshape(-1, in_ch), w, b, gamma, beta).reshape(*lead, out_ch)

    # 1) f32 path (matches PyTorch numerics).
    out = fc_forward(x, w, b, gamma, beta)
    jax.block_until_ready(out)
    assert out.shape == (*lead, out_ch)
    assert jnp.allclose(out, ref, atol=1e-5, rtol=1e-5), "f32 mismatch vs reference"

    # 2) Ragged batch — exercises the pl.cdiv grid + Pallas partial-block
    #    masking (no wrapper pad/slice); also verify no NaN/Inf leaked in.
    out_ragged = fc_forward(x.reshape(-1, in_ch)[:27], w, b, gamma, beta)
    jax.block_until_ready(out_ragged)
    assert out_ragged.shape == (27, out_ch)
    assert jnp.allclose(out_ragged, ref.reshape(-1, out_ch)[:27],
                        atol=1e-5, rtol=1e-5), "ragged mismatch vs reference"
    assert bool(jnp.all(jnp.isfinite(out_ragged))), "ragged output not finite"

    # 3) bf16 MXU path (W cast in wrapper, x cast in-kernel) + bf16 output.
    out_bf16 = fc_forward(x, w, b, gamma, beta,
                          matmul_dtype=jnp.bfloat16, out_dtype=jnp.bfloat16)
    jax.block_until_ready(out_bf16)
    assert out_bf16.dtype == jnp.bfloat16
    assert jnp.allclose(out_bf16.astype(jnp.float32), ref,
                        atol=5e-2, rtol=5e-2), "bf16 mismatch"

    print("KERNEL_OK")
</pallas_src>

<mosaic_0001>
module attributes {stable_mosaic.version = 11 : i64} {
  func.func @_fc_kernel(%arg0: i32, %arg1: memref<32x32xf32, #tpu.memory_space<vmem>>, %arg2: memref<32x128xf32, #tpu.memory_space<vmem>>, %arg3: memref<3x128xf32, #tpu.memory_space<vmem>>, %arg4: memref<32x128xf32, #tpu.memory_space<vmem>>) attributes {dimension_semantics = [#tpu.dimension_semantics<parallel>], iteration_bounds = array<i64: 1>, scalar_prefetch = 0 : i64, scratch_operands = 0 : i64, tpu.core_type = #tpu.core_type<tc>, window_params = [{transform_indices = @transform_0, window_bounds = array<i64: 32, 32>}, {pipeline_mode = #tpu.pipeline_mode<synchronous>, transform_indices = @transform_1, window_bounds = array<i64: 32, 128>}, {pipeline_mode = #tpu.pipeline_mode<synchronous>, transform_indices = @transform_2, window_bounds = array<i64: 3, 128>}, {transform_indices = @transform_3, window_bounds = array<i64: 32, 128>}]} {
    %c0 = arith.constant 0 : index
    %c0_0 = arith.constant 0 : index
    %0 = vector.load %arg1[%c0, %c0_0] : memref<32x32xf32, #tpu.memory_space<vmem>>, vector<32x32xf32>
    %c0_1 = arith.constant 0 : index
    %c0_2 = arith.constant 0 : index
    %1 = vector.load %arg2[%c0_1, %c0_2] : memref<32x128xf32, #tpu.memory_space<vmem>>, vector<32x128xf32>
    %cst = arith.constant dense<0.000000e+00> : vector<32x128xf32>
    %2 = tpu.matmul %0, %1, %cst {dimension_numbers = #tpu.dot_dimension_numbers<[1], [0], [0], [1], [0, 0, 1, 1], [], []>} : vector<32x32xf32>, vector<32x128xf32>, vector<32x128xf32> -> vector<32x128xf32>
    %c0_3 = arith.constant 0 : index
    %c0_4 = arith.constant 0 : index
    %3 = vector.load %arg3[%c0_3, %c0_4] : memref<3x128xf32, #tpu.memory_space<vmem>>, vector<3x128xf32>
    %4 = vector.extract_strided_slice %3 {offsets = [0, 0], sizes = [1, 128], strides = [1, 1]} : vector<3x128xf32> to vector<1x128xf32>
    %5 = vector.broadcast %4 : vector<1x128xf32> to vector<32x128xf32>
    %6 = arith.addf %2, %5 : vector<32x128xf32>
    %cst_5 = arith.constant dense<0.000000e+00> : vector<32xf32>
    %7 = vector.multi_reduction <add>, %6, %cst_5 [1] : vector<32x128xf32> to vector<32xf32>
    %8 = vector.shape_cast %7 : vector<32xf32> to vector<32x1xf32>
    %cst_6 = arith.constant 1.280000e+02 : f32
    %9 = vector.broadcast %cst_6 : f32 to vector<32x1xf32>
    %10 = arith.divf %8, %9 : vector<32x1xf32>
    %11 = vector.broadcast %10 : vector<32x1xf32> to vector<32x128xf32>
    %12 = arith.subf %6, %11 : vector<32x128xf32>
    %13 = arith.mulf %12, %12 : vector<32x128xf32>
    %cst_7 = arith.constant dense<0.000000e+00> : vector<32xf32>
    %14 = vector.multi_reduction <add>, %13, %cst_7 [1] : vector<32x128xf32> to vector<32xf32>
    %15 = vector.shape_cast %14 : vector<32xf32> to vector<32x1xf32>
    %cst_8 = arith.constant 1.280000e+02 : f32
    %16 = vector.broadcast %cst_8 : f32 to vector<32x1xf32>
    %17 = arith.divf %15, %16 : vector<32x1xf32>
    %cst_9 = arith.constant 9.99999974E-6 : f32
    %18 = vector.broadcast %cst_9 : f32 to vector<32x1xf32>
    %19 = arith.addf %17, %18 : vector<32x1xf32>
    %20 = math.rsqrt %19 : vector<32x1xf32>
    %21 = vector.broadcast %20 : vector<32x1xf32> to vector<32x128xf32>
    %22 = arith.mulf %12, %21 : vector<32x128xf32>
    %23 = vector.extract_strided_slice %3 {offsets = [1, 0], sizes = [1, 128], strides = [1, 1]} : vector<3x128xf32> to vector<1x128xf32>
    %24 = vector.broadcast %23 : vector<1x128xf32> to vector<32x128xf32>
    %25 = arith.mulf %22, %24 : vector<32x128xf32>
    %26 = vector.extract_strided_slice %3 {offsets = [2, 0], sizes = [1, 128], strides = [1, 1]} : vector<3x128xf32> to vector<1x128xf32>
    %27 = vector.broadcast %26 : vector<1x128xf32> to vector<32x128xf32>
    %28 = arith.addf %25, %27 : vector<32x128xf32>
    %cst_10 = arith.constant 0.000000e+00 : f32
    %29 = vector.broadcast %cst_10 : f32 to vector<32x128xf32>
    %30 = arith.cmpf oge, %28, %29 : vector<32x128xf32>
    %cst_11 = arith.constant 0.00999999977 : f32
    %31 = vector.broadcast %cst_11 : f32 to vector<32x128xf32>
    %32 = arith.mulf %31, %28 : vector<32x128xf32>
    %33 = arith.select %30, %28, %32 : vector<32x128xi1>, vector<32x128xf32>
    %c0_12 = arith.constant 0 : index
    %c0_13 = arith.constant 0 : index
    %34 = vector.load %arg4[%c0_12, %c0_13] : memref<32x128xf32, #tpu.memory_space<vmem>>, vector<32x128xf32>
    tpu.vector_store %arg4[%c0_12, %c0_13], %33 {strides = array<i32>} : memref<32x128xf32, #tpu.memory_space<vmem>>, vector<32x128xf32>,
    return
  }
  func.func @transform_0(%arg0: i32) -> (i32, i32) {
    %c0_i32 = arith.constant 0 : i32
    %c0_i32_0 = arith.constant 0 : i32
    return %arg0, %c0_i32 : i32, i32
  }
  func.func @transform_1(%arg0: i32) -> (i32, i32) {
    %c0_i32 = arith.constant 0 : i32
    %c0_i32_0 = arith.constant 0 : i32
    %c0_i32_1 = arith.constant 0 : i32
    return %c0_i32, %c0_i32_0 : i32, i32
  }
  func.func @transform_2(%arg0: i32) -> (i32, i32) {
    %c0_i32 = arith.constant 0 : i32
    %c0_i32_0 = arith.constant 0 : i32
    %c0_i32_1 = arith.constant 0 : i32
    return %c0_i32, %c0_i32_0 : i32, i32
  }
  func.func @transform_3(%arg0: i32) -> (i32, i32) {
    %c0_i32 = arith.constant 0 : i32
    %c0_i32_0 = arith.constant 0 : i32
    return %arg0, %c0_i32 : i32, i32
  }
}

</mosaic_0001>

<llo_original>
// kernel: fc_forward.1
$region0: #{fc_forward.1}
  #allocation0 [shape = 'u32[]', space=smem, size = 0x4, offset = 0x4, fixed_abs, tag = 'smem constant byte address 0x4 - core index']
  #allocation1 [shape = 'u32[144,128]{1,0:T(1,128)}', space=vmem, size = 0x12000, scoped, tag = 'internal scratch']
  %s0 = inlined_call_operand.hbm [shape: f32[32,32], index: 0, kind: input, shape index: {}]
  %s1 = inlined_call_operand.hbm [shape: f32[32,128], index: 1, kind: input, shape index: {}]
  %s2 = inlined_call_operand.vmem [shape: f32[3,128], index: 2, kind: input, shape index: {}]
  %s3 = inlined_call_operand.hbm [shape: f32[32,128], index: 3, kind: output, shape index: {}]
  %s4 = sld [smem:[#allocation0]]
  $region30: #{fc_forward.1} parent=0
    _
  %s6 = ssub.s32 1, %s4
  %s7 = scalar_select 0, %s6, %s4
  $region1: #{fc_forward.1} parent=0
    #allocation2 [shape = 'u8[16384]{0}', space=vmem, size = 0x4000, scoped, tag = 'input window, operand 0, single buffered']
    #allocation3 [shape = 's32[1]{0}', space=sflag, size = 0x4, scoped, tag = 'scoped memory for fc_forward.1']
    #allocation4 [shape = 's32[1]{0}', space=sflag, size = 0x4, scoped, tag = 'scoped memory for fc_forward.1']
    #allocation5 [shape = 'u8[16384]{0}', space=vmem, size = 0x4000, scoped, tag = 'input window, operand 1, single buffered']
    #allocation6 [shape = 's32[1]{0}', space=sflag, size = 0x4, scoped, tag = 'scoped memory for fc_forward.1']
    #allocation7 [shape = 'u8[16384]{0}', space=vmem, size = 0x4000, scoped, tag = 'output window, operand 0, single buffered']
    %8 = vsyncpa [#allocation3], 0
    %9 = vsyncpa [#allocation6], 0
    %10 = vsyncpa [#allocation4], 0
    // Predicated region
    $region2: #{fc_forward.1} parent=1 // pred_check
      _
    $region3: #{fc_forward.1} parent=1 // pred_check_branch
      %12 = sbr.rel (0) target = $region5
    $region4: #{fc_forward.1} parent=1 // pred_region
      %s14 = ssub.s32 512, 512
      %15 = vsyncadd [#allocation3], %s14
      %s16 = sshll.u32 [#allocation2], 4
      %s17 = int_to_ptr.vmem [resolvable:$true] %s16
      %22 = dma.hbm_to_vmem [thread:$0]  %s0, 512, %s17, [#allocation3], 128, 128, 8
    $region5: #{fc_forward.1} parent=1 // pred_fallthru
      _
    // Predicated region
    $region6: #{fc_forward.1} parent=1 // pred_check
      _
    $region7: #{fc_forward.1} parent=1 // pred_check_branch
      %24 = sbr.rel (0) target = $region9
    $region8: #{fc_forward.1} parent=1 // pred_region
      %s26 = ssub.s32 512, 512
      %27 = vsyncadd [#allocation6], %s26
      %s28 = sshll.u32 [#allocation5], 4
      %s29 = int_to_ptr.vmem [resolvable:$true] %s28
      %34 = dma.hbm_to_vmem [thread:$0]  %s1, 512, %s29, [#allocation6], 128, 128, 8
    $region9: #{fc_forward.1} parent=1 // pred_fallthru
      _
    // Predicated region
    $region10: #{fc_forward.1} parent=1 // pred_check
      _
    $region11: #{fc_forward.1} parent=1 // pred_check_branch
      %36 = sbr.rel (0) target = $region13
    $region12: #{fc_forward.1} parent=1 // pred_region
      _
    $region13: #{fc_forward.1} parent=1 // pred_fallthru
      _
    // Predicated region
    $region14: #{fc_forward.1} parent=1 // pred_check
      _
    $region15: #{fc_forward.1} parent=1 // pred_check_branch
      %38 = sbr.rel (0) target = $region17
    $region16: #{fc_forward.1} parent=1 // pred_region
      %39 = dma.done [#allocation3], 512
    $region17: #{fc_forward.1} parent=1 // pred_fallthru
      _
    // Predicated region
    $region18: #{fc_forward.1} parent=1 // pred_check
      _
    $region19: #{fc_forward.1} parent=1 // pred_check_branch
      %41 = sbr.rel (0) target = $region21
    $region20: #{fc_forward.1} parent=1 // pred_region
      %42 = dma.done [#allocation6], 512
    $region21: #{fc_forward.1} parent=1 // pred_fallthru
      _
    %v43 = vld [vmem:[#allocation2] sm:$0xff]
    %v44 = vld [vmem:[#allocation2 + $0x8] sm:$0xff]
    %v45 = vld [vmem:[#allocation2 + $0x10] sm:$0xff]
    %v46 = vld [vmem:[#allocation2 + $0x18] sm:$0xff]
    %v47 = vld [vmem:[#allocation5] sm:$0xff]
    %v48 = vld [vmem:[#allocation5 + $0x8] sm:$0xff]
    %v49 = vld [vmem:[#allocation5 + $0x10] sm:$0xff]
    %v50 = vld [vmem:[#allocation5 + $0x18] sm:$0xff]
    %v51 = vld [vmem:[%s2] sm:$0x7]
    %v52 = vlaneseq
    %v53 = vshrl.u32 %v52, 7
    %v54 = vsub.s32 0, %v53
    %v55 = vrot.slane %v51, %v54
    %vm56 = vcmask 261120
    %v58 = vsel %vm56, %v43, 0
    %v61 = vsel %vm56, %v44, 0
    %v64 = vsel %vm56, %v45, 0
    %v67 = vsel %vm56, %v46, 0
    %69 = vmatprep.subr.mxu0 0.0
    %70 = vmatpush1.msra.mxu0 %v47
    %71 = vmatprep.subr.mxu0 0.0
    %72 = vmatpush1.msra.mxu0 %v48
    %73 = vmatprep.subr.mxu0 0.0
    %74 = vmatpush1.msra.mxu0 %v49
    %75 = vmatprep.subr.mxu0 0.0
    %76 = vmatpush1.msra.mxu0 %v50
    %77 = vmatprep.subr.mxu0 0.0
    %78 = vmatpush1.msra.mxu0 0.0
    %79 = vmatprep.subr.mxu0 0.0
    %80 = vmatpush1.msra.mxu0 0.0
    %81 = vmatprep.subr.mxu0 0.0
    %82 = vmatpush1.msra.mxu0 0.0
    %83 = vmatprep.subr.mxu0 0.0
    %84 = vmatpush1.msra.mxu0 0.0
    %85 = vmatprep.subr.mxu0 0.0
    %86 = vmatpush1.msra.mxu0 0.0
    %87 = vmatprep.subr.mxu0 0.0
    %88 = vmatpush1.msra.mxu0 0.0
    %89 = vmatprep.subr.mxu0 0.0
    %90 = vmatpush1.msra.mxu0 0.0
    %91 = vmatprep.subr.mxu0 0.0
    %92 = vmatpush1.msra.mxu0 0.0
    %93 = vmatprep.subr.mxu0 0.0
    %94 = vmatpush1.msra.mxu0 0.0
    %95 = vmatprep.subr.mxu0 0.0
    %96 = vmatpush1.msra.mxu0 0.0
    %97 = vmatprep.subr.mxu0 0.0
    %98 = vmatpush1.msra.mxu0 0.0
    %99 = vmatprep.subr.mxu0 0.0
    %100 = vmatpush1.msra.mxu0 0.0
    %101 = vmatprep.subr.mxu0 0.0
    %102 = vmatpush1.msra.mxu0 0.0
    %103 = vmatprep.subr.mxu0 0.0
    %104 = vmatpush1.msra.mxu0 0.0
    %105 = vmatprep.subr.mxu0 0.0
    %106 = vmatpush1.msra.mxu0 0.0
    %107 = vmatprep.subr.mxu0 0.0
    %108 = vmatpush1.msra.mxu0 0.0
    %109 = vmatprep.subr.mxu0 0.0
    %110 = vmatpush1.msra.mxu0 0.0
    %111 = vmatprep.subr.mxu0 0.0
    %112 = vmatpush1.msra.mxu0 0.0
    %113 = vmatprep.subr.mxu0 0.0
    %114 = vmatpush1.msra.mxu0 0.0
    %115 = vmatprep.subr.mxu0 0.0
    %116 = vmatpush1.msra.mxu0 0.0
    %117 = vmatprep.subr.mxu0 0.0
    %118 = vmatpush1.msra.mxu0 0.0
    %119 = vmatprep.subr.mxu0 0.0
    %120 = vmatpush1.msra.mxu0 0.0
    %121 = vmatprep.subr.mxu0 0.0
    %122 = vmatpush1.msra.mxu0 0.0
    %123 = vmatprep.subr.mxu0 0.0
    %124 = vmatpush1.msra.mxu0 0.0
    %125 = vmatprep.subr.mxu0 0.0
    %126 = vmatpush1.msra.mxu0 0.0
    %127 = vmatprep.subr.mxu0 0.0
    %128 = vmatpush1.msra.mxu0 0.0
    %129 = vmatprep.subr.mxu0 0.0
    %130 = vmatpush1.msra.mxu0 0.0
    %131 = vmatprep.subr.mxu0 0.0
    %132 = vmatpush1.msra.mxu0 0.0
    %133 = vmatprep.mubr.f32.mxu0 0.0
    %134 = vmatmul.mubr.f32.gmra.mrb[0].mxu0 %v58
    %v135 = vpop.f32.mrb[0].mxu0
    %v136 = vadd.f32 %v55, %v135
    %v137 = vpop.f32.mrb[0].mxu0
    %138 = vmatprep.mubr.f32.mxu0 0.0
    %139 = vmatmul.mubr.f32.gmra.mrb[0].mxu0 %v61
    %v140 = vpop.f32.mrb[0].mxu0
    %v141 = vadd.f32 %v55, %v140
    %v142 = vpop.f32.mrb[0].mxu0
    %143 = vmatprep.mubr.f32.mxu0 0.0
    %144 = vmatmul.mubr.f32.gmra.mrb[0].mxu0 %v64
    %v145 = vpop.f32.mrb[0].mxu0
    %v146 = vadd.f32 %v55, %v145
    %v147 = vpop.f32.mrb[0].mxu0
    %148 = vmatprep.mubr.f32.mxu0 0.0
    %149 = vmatmul.mubr.f32.gmra.mrb[0].mxu0 %v67
    %v150 = vpop.f32.mrb[0].mxu0
    %v151 = vadd.f32 %v55, %v150
    %v152 = vpop.f32.mrb[0].mxu0
    %153 = vdwg.mxu0
    %154 = vadd.xlane.f32.xlu0 %v136
    %v155 = vpop.xlane.xlu0 %154
    %156 = vadd.xlane.f32.xlu0 %v141
    %v157 = vpop.xlane.xlu0 %156
    %158 = vadd.xlane.f32.xlu0 %v146
    %v159 = vpop.xlane.xlu0 %158
    %160 = vadd.xlane.f32.xlu0 %v151
    %v161 = vpop.xlane.xlu0 %160
    %v162 = vrcp.pop 128.0
    %v163 = vmul.f32 %v155, %v162
    %v164 = vmul.f32 %v157, %v162
    %v165 = vmul.f32 %v159, %v162
    %v166 = vmul.f32 %v161, %v162
    %v167 = vsub.f32 %v136, %v163
    %v168 = vsub.f32 %v141, %v164
    %v169 = vsub.f32 %v146, %v165
    %v170 = vsub.f32 %v151, %v166
    %v171 = vmul.f32 %v167, %v167
    %v172 = vmul.f32 %v168, %v168
    %v173 = vmul.f32 %v169, %v169
    %v174 = vmul.f32 %v170, %v170
    %175 = vadd.xlane.f32.xlu0 %v171
    %v176 = vpop.xlane.xlu0 %175
    %177 = vadd.xlane.f32.xlu0 %v172
    %v178 = vpop.xlane.xlu0 %177
    %179 = vadd.xlane.f32.xlu0 %v173
    %v180 = vpop.xlane.xlu0 %179
    %181 = vadd.xlane.f32.xlu0 %v174
    %v182 = vpop.xlane.xlu0 %181
    %v183 = vmul.f32 %v176, %v162
    %v184 = vmul.f32 %v178, %v162
    %v185 = vmul.f32 %v180, %v162
    %v186 = vmul.f32 %v182, %v162
    %v187 = vadd.f32 %v183, 1e-05
    %v188 = vadd.f32 %v184, 1e-05
    %v189 = vadd.f32 %v185, 1e-05
    %v190 = vadd.f32 %v186, 1e-05
    %v191 = vrsqrt.pop %v187
    %v192 = vrsqrt.pop %v188
    %v193 = vrsqrt.pop %v189
    %v194 = vrsqrt.pop %v190
    %v195 = vmul.f32 %v167, %v191
    %v196 = vmul.f32 %v168, %v192
    %v197 = vmul.f32 %v169, %v193
    %v198 = vmul.f32 %v170, %v194
    %v199 = vlaneseq
    %v200 = vshrl.u32 %v199, 7
    %v201 = vsub.s32 1, %v200
    %v202 = vrot.slane %v51, %v201
    %v203 = vmul.f32 %v195, %v202
    %v204 = vmul.f32 %v196, %v202
    %v205 = vmul.f32 %v197, %v202
    %v206 = vmul.f32 %v198, %v202
    %v207 = vlaneseq
    %v208 = vshrl.u32 %v207, 7
    %v209 = vsub.s32 2, %v208
    %v210 = vrot.slane %v51, %v209
    %v211 = vadd.f32 %v203, %v210
    %v212 = vadd.f32 %v204, %v210
    %v213 = vadd.f32 %v205, %v210
    %v214 = vadd.f32 %v206, %v210
    %vm215 = vcmp.ge.f32.partialorder %v211, 0.0
    %vm216 = vcmp.ge.f32.partialorder %v212, 0.0
    %vm217 = vcmp.ge.f32.partialorder %v213, 0.0
    %vm218 = vcmp.ge.f32.partialorder %v214, 0.0
    %v219 = vmul.f32 %v211, 0.01
    %v220 = vmul.f32 %v212, 0.01
    %v221 = vmul.f32 %v213, 0.01
    %v222 = vmul.f32 %v214, 0.01
    %v223 = vsel %vm215, %v211, %v219
    %v224 = vsel %vm216, %v212, %v220
    %v225 = vsel %vm217, %v213, %v221
    %v226 = vsel %vm218, %v214, %v222
    %227 = vst [vmem:[#allocation7] sm:$0xff] %v223
    %228 = vst [vmem:[#allocation7 + $0x8] sm:$0xff] %v224
    %229 = vst [vmem:[#allocation7 + $0x10] sm:$0xff] %v225
    %230 = vst [vmem:[#allocation7 + $0x18] sm:$0xff] %v226
    // Predicated region
    $region22: #{fc_forward.1} parent=1 // pred_check
      _
    $region23: #{fc_forward.1} parent=1 // pred_check_branch
      %232 = sbr.rel (0) target = $region25
    $region24: #{fc_forward.1} parent=1 // pred_region
      %s234 = ssub.s32 512, 512
      %235 = vsyncadd [#allocation4], %s234
      %s236 = sshll.u32 [#allocation7], 4
      %s237 = int_to_ptr.vmem [resolvable:$true] %s236
      %242 = dma.vmem_to_hbm [thread:$0]  %s237, 512, %s3, [#allocation4], 128, 128, 8
    $region25: #{fc_forward.1} parent=1 // pred_fallthru
      _
    // Predicated region
    $region26: #{fc_forward.1} parent=1 // pred_check
      _
    $region27: #{fc_forward.1} parent=1 // pred_check_branch
      %244 = sbr.rel (0) target = $region29
    $region28: #{fc_forward.1} parent=1 // pred_region
      %245 = dma.done [#allocation4], 512
    $region29: #{fc_forward.1} parent=1 // pred_fallthru
      _
    %246 = vsyncpa [#allocation3], 1
    %247 = vsyncpa [#allocation6], 1
    %248 = vsyncpa [#allocation4], 1

</llo_original>
